<compile_context>
chip_gen: v7x
topology: tpu7x:2x2x1
jax: 0.10.0
libtpu: 0.0.40
codegen_flags: <defaults>
</compile_context>

<pallas_src>
import jax
import jax.numpy as jnp
from jax.experimental import pallas as pl
from jax.experimental.pallas import tpu as pltpu

LANES = 128


def logreg_kernel(w_ref, b_ref, x_ref, o_ref):
    # w_ref: (F,)          SMEM scalars  (nn.Linear weight, flattened)
    # b_ref: (1,)          SMEM scalar   (nn.Linear bias)
    # x_ref: (F, TB, 128)  VMEM tile     (feature-major, batch on sublanes+lanes)
    # o_ref: (TB, 128)     VMEM tile     (dense 2-D output slab)
    f_dim = x_ref.shape[0]
    tb, tl = o_ref.shape

    # Bias folded into the accumulator init; unrolled VPU multiply-accumulate
    # over the small, static feature dim.  x_ref[f] is a dense (TB, 128) slab.
    acc = jnp.full((tb, tl), b_ref[0], dtype=jnp.float32)
    for f in range(f_dim):
        acc = acc + w_ref[f] * x_ref[f]

    # sigmoid(z) = 1 / (1 + exp(-z)): exp on the EUP, divide replaced by the
    # (otherwise idle) EUP approximate reciprocal.
    o_ref[...] = pl.reciprocal(1.0 + jnp.exp(-acc), approx=True)


def logistic_regression2(x, weight, bias):
    """Pallas forward matching LogisticRegression2.forward.

    x:      (N, F) float32
    weight: (1, F) float32   (torch.nn.Linear weight layout)
    bias:   (1,)   float32
    returns (N, 1) float32 probabilities
    """
    n, f = x.shape
    rows = pl.cdiv(n, LANES)
    n_pad = rows * LANES

    # Single fused relayout pass to the feature-major (F, rows, 128) layout the
    # kernel wants (batch on sublanes + lanes).  Only the tail is padded up to
    # the next 128 boundary -- no tile-sized padded copy is materialized.
    # TODO(synk): if the producer can hand feature-major data directly, drop
    # this relayout and the kernel reads x straight from HBM.
    xp = jnp.pad(x.astype(jnp.float32), ((0, n_pad - n), (0, 0)))
    xr = xp.T.reshape(f, rows, LANES)

    w_flat = weight.reshape(f).astype(jnp.float32)
    b_flat = bias.reshape(1).astype(jnp.float32)

    # Tile sizing: keep the double-buffered footprint
    #   2 * (F * TB * 128 * 4)  [x blocks]  +  2 * (TB * 128 * 4)  [out blocks]
    # around <= 28 MiB so it fits comfortably under the explicit 40 MiB scoped
    # VMEM limit on every generation (v7x has only 64 MiB physical VMEM;
    # v5e's scoped default is 16 MiB and must be raised).
    vmem_block_budget = 28 * 1024 * 1024
    tb_budget = vmem_block_budget // (2 * (f + 1) * LANES * 4)
    tb_max = max(8, (tb_budget // 8) * 8)          # multiple of 8 sublanes
    tb = rows if rows <= tb_max else tb_max        # full dim OK for tiny N
    grid = (pl.cdiv(rows, tb),)                    # partial last block is masked

    out = pl.pallas_call(
        logreg_kernel,
        out_shape=jax.ShapeDtypeStruct((rows, LANES), jnp.float32),
        grid=grid,
        in_specs=[
            pl.BlockSpec(memory_space=pltpu.MemorySpace.SMEM),   # weight scalars
            pl.BlockSpec(memory_space=pltpu.MemorySpace.SMEM),   # bias scalar
            pl.BlockSpec((f, tb, LANES), lambda i: (0, i, 0)),   # x tile
        ],
        out_specs=pl.BlockSpec((tb, LANES), lambda i: (i, 0)),   # dense out tile
        compiler_params=pltpu.CompilerParams(
            dimension_semantics=("parallel",),
            vmem_limit_bytes=40 * 1024 * 1024,
        ),
    )(w_flat, b_flat, xr)

    # Layout plumbing on the (small) output: drop padding, restore (N, 1).
    return out.reshape(-1)[:n].reshape(n, 1)


if __name__ == "__main__":
    num_features = 2
    batch = 8

    key = jax.random.PRNGKey(0)
    kx, kw, kb = jax.random.split(key, 3)
    x = jax.random.normal(kx, (batch, num_features), dtype=jnp.float32)

    # Parameters exactly as LogisticRegression2.__init__: zero weight & bias.
    weight = jnp.zeros((1, num_features), dtype=jnp.float32)
    bias = jnp.zeros((1,), dtype=jnp.float32)

    probas = jax.block_until_ready(logistic_regression2(x, weight, bias))
    ref = jax.nn.sigmoid(x @ weight.T + bias)
    assert probas.shape == (batch, 1)
    # approx EUP reciprocal -> compare with a slightly loosened tolerance.
    assert jnp.allclose(probas, ref, atol=2e-3, rtol=2e-3), (probas, ref)

    # Extra check with non-zero params to validate the dot-product path.
    w2 = jax.random.normal(kw, (1, num_features), dtype=jnp.float32)
    b2 = jax.random.normal(kb, (1,), dtype=jnp.float32)
    probas2 = jax.block_until_ready(logistic_regression2(x, w2, b2))
    ref2 = jax.nn.sigmoid(x @ w2.T + b2)
    assert jnp.allclose(probas2, ref2, atol=2e-3, rtol=2e-3), (probas2, ref2)

    print("KERNEL_OK")
</pallas_src>

<mosaic_0001>
module attributes {stable_mosaic.version = 11 : i64} {
  func.func @logreg_kernel(%arg0: i32, %arg1: memref<2xf32, #tpu.memory_space<smem>>, %arg2: memref<1xf32, #tpu.memory_space<smem>>, %arg3: memref<2x1x128xf32, #tpu.memory_space<vmem>>, %arg4: memref<1x128xf32, #tpu.memory_space<vmem>>) attributes {dimension_semantics = [#tpu.dimension_semantics<parallel>], iteration_bounds = array<i64: 1>, scalar_prefetch = 0 : i64, scratch_operands = 0 : i64, tpu.core_type = #tpu.core_type<tc>, window_params = [{transform_indices = @transform_0, window_bounds = array<i64: 2>}, {transform_indices = @transform_1, window_bounds = array<i64: 1>}, {transform_indices = @transform_2, window_bounds = array<i64: 2, 1, 128>}, {transform_indices = @transform_3, window_bounds = array<i64: 1, 128>}]} {
    %c0 = arith.constant 0 : index
    %0 = memref.load %arg2[%c0] : memref<1xf32, #tpu.memory_space<smem>>
    %1 = vector.broadcast %0 : f32 to vector<1x128xf32>
    %c0_0 = arith.constant 0 : index
    %2 = memref.load %arg1[%c0_0] : memref<2xf32, #tpu.memory_space<smem>>
    %c0_1 = arith.constant 0 : index
    %c0_2 = arith.constant 0 : index
    %c0_3 = arith.constant 0 : index
    %3 = vector.load %arg3[%c0_1, %c0_2, %c0_3] : memref<2x1x128xf32, #tpu.memory_space<vmem>>, vector<1x1x128xf32>
    %4 = vector.shape_cast %3 : vector<1x1x128xf32> to vector<1x128xf32>
    %5 = vector.broadcast %2 : f32 to vector<1x128xf32>
    %6 = arith.mulf %5, %4 : vector<1x128xf32>
    %7 = arith.addf %1, %6 : vector<1x128xf32>
    %c1 = arith.constant 1 : index
    %8 = memref.load %arg1[%c1] : memref<2xf32, #tpu.memory_space<smem>>
    %c1_4 = arith.constant 1 : index
    %c0_5 = arith.constant 0 : index
    %c0_6 = arith.constant 0 : index
    %9 = vector.load %arg3[%c1_4, %c0_5, %c0_6] : memref<2x1x128xf32, #tpu.memory_space<vmem>>, vector<1x1x128xf32>
    %10 = vector.shape_cast %9 : vector<1x1x128xf32> to vector<1x128xf32>
    %11 = vector.broadcast %8 : f32 to vector<1x128xf32>
    %12 = arith.mulf %11, %10 : vector<1x128xf32>
    %13 = arith.addf %7, %12 : vector<1x128xf32>
    %cst = arith.constant 0.000000e+00 : f32
    %14 = vector.broadcast %cst : f32 to vector<1x128xf32>
    %15 = arith.subf %14, %13 : vector<1x128xf32>
    %16 = math.exp %15 : vector<1x128xf32>
    %cst_7 = arith.constant 1.000000e+00 : f32
    %17 = vector.broadcast %cst_7 : f32 to vector<1x128xf32>
    %18 = arith.addf %17, %16 : vector<1x128xf32>
    %19 = tpu.reciprocal %18 {approx = true} : vector<1x128xf32> -> vector<1x128xf32>
    %c0_8 = arith.constant 0 : index
    %c0_9 = arith.constant 0 : index
    %20 = vector.load %arg4[%c0_8, %c0_9] : memref<1x128xf32, #tpu.memory_space<vmem>>, vector<1x128xf32>
    tpu.vector_store %arg4[%c0_8, %c0_9], %19 {strides = array<i32>} : memref<1x128xf32, #tpu.memory_space<vmem>>, vector<1x128xf32>,
    return
  }
  func.func @transform_0(%arg0: i32) -> i32 {
    %c0_i32 = arith.constant 0 : i32
    %c0_i32_0 = arith.constant 0 : i32
    return %c0_i32 : i32
  }
  func.func @transform_1(%arg0: i32) -> i32 {
    %c0_i32 = arith.constant 0 : i32
    %c0_i32_0 = arith.constant 0 : i32
    return %c0_i32 : i32
  }
  func.func @transform_2(%arg0: i32) -> (i32, i32, i32) {
    %c0_i32 = arith.constant 0 : i32
    %c0_i32_0 = arith.constant 0 : i32
    %c0_i32_1 = arith.constant 0 : i32
    return %c0_i32, %arg0, %c0_i32_0 : i32, i32, i32
  }
  func.func @transform_3(%arg0: i32) -> (i32, i32) {
    %c0_i32 = arith.constant 0 : i32
    %c0_i32_0 = arith.constant 0 : i32
    return %arg0, %c0_i32 : i32, i32
  }
}

</mosaic_0001>

<llo_original>
// kernel: tpu_custom_call.1
$region0: #{tpu_custom_call.1}
  #allocation0 [shape = 'u32[]', space=smem, size = 0x4, offset = 0x4, fixed_abs, tag = 'smem constant byte address 0x4 - core index']
  #allocation1 [shape = 'u32[144,128]{1,0:T(1,128)}', space=vmem, size = 0x12000, scoped, tag = 'internal scratch']
  #allocation2 [shape = 'f32[1]{0:T(128)S(6)}', space=smem, size = 0x200, scoped, tag = 'scoped memory for tpu_custom_call.1']
  %s0 = inlined_call_operand.vmem [shape: f32[2], index: 0, kind: input, shape index: {}]
  %s1 = inlined_call_operand.<no memory space> [shape: f32[1], index: 1, kind: input, shape index: {}]
  %s2 = inlined_call_operand.vmem [shape: f32[2,1,128], index: 2, kind: input, shape index: {}]
  %s3 = inlined_call_operand.hbm [shape: f32[1,128], index: 3, kind: output, shape index: {}]
  %s4 = sld [smem:[#allocation0]]
  $region26: #{tpu_custom_call.1} parent=0
    _
  %s6 = ssub.s32 1, %s4
  %s7 = scalar_select 0, %s6, %s4
  %8 = sst [smem:[#allocation2]] %s1
  $region1: #{tpu_custom_call.1} parent=0
    #allocation3 [shape = 'u8[512]{0}', space=smem, size = 0x200, scoped, tag = 'input window, operand 0, single buffered']
    #allocation4 [shape = 's32[1]{0}', space=sflag, size = 0x4, scoped, tag = 'scoped memory for tpu_custom_call.1']
    #allocation5 [shape = 's32[1]{0}', space=sflag, size = 0x4, scoped, tag = 'scoped memory for tpu_custom_call.1']
    #allocation6 [shape = 'u8[512]{0}', space=vmem, size = 0x400, scoped, tag = 'output window, operand 0, single buffered']
    %9 = vsyncpa [#allocation5], 0
    %10 = vsyncpa [#allocation4], 0
    // Predicated region
    $region2: #{tpu_custom_call.1} parent=1 // pred_check
      _
    $region3: #{tpu_custom_call.1} parent=1 // pred_check_branch
      %12 = sbr.rel (0) target = $region5
    $region4: #{tpu_custom_call.1} parent=1 // pred_region
      %s14 = ssub.s32 16, 16
      %15 = vsyncadd [#allocation5], %s14
      %s17 = sshll.u32 %s0, 4
      %s18 = int_to_ptr.vmem [resolvable:$true] %s17
      %20 = dma.vmem_to_smem %s18, 16, [#allocation3], [#allocation5]
    $region5: #{tpu_custom_call.1} parent=1 // pred_fallthru
      _
    // Predicated region
    $region6: #{tpu_custom_call.1} parent=1 // pred_check
      _
    $region7: #{tpu_custom_call.1} parent=1 // pred_check_branch
      %22 = sbr.rel (0) target = $region9
    $region8: #{tpu_custom_call.1} parent=1 // pred_region
      _
    $region9: #{tpu_custom_call.1} parent=1 // pred_fallthru
      _
    // Predicated region
    $region10: #{tpu_custom_call.1} parent=1 // pred_check
      _
    $region11: #{tpu_custom_call.1} parent=1 // pred_check_branch
      %24 = sbr.rel (0) target = $region13
    $region12: #{tpu_custom_call.1} parent=1 // pred_region
      _
    $region13: #{tpu_custom_call.1} parent=1 // pred_fallthru
      _
    // Predicated region
    $region14: #{tpu_custom_call.1} parent=1 // pred_check
      _
    $region15: #{tpu_custom_call.1} parent=1 // pred_check_branch
      %26 = sbr.rel (0) target = $region17
    $region16: #{tpu_custom_call.1} parent=1 // pred_region
      %27 = dma.done [#allocation5], 16
    $region17: #{tpu_custom_call.1} parent=1 // pred_fallthru
      _
    %28 = sfence
    %s29 = sld [smem:[#allocation2]]
    %v30 = vstv %s29
    %s31 = sld [smem:[#allocation3]]
    %v32 = vld [vmem:[%s2] sm:$0x1]
    %v33 = vstv %s31
    %v34 = vmul.f32 %v33, %v32
    %v35 = vadd.f32 %v30, %v34
    %s36 = sld [smem:[#allocation3 + $0x1]]
    %s37 = scalar_lea.vmem %s2, 1
    %v38 = vld [vmem:[%s37] sm:$0x1]
    %v39 = vstv %s36
    %v40 = vmul.f32 %v39, %v38
    %v41 = vadd.f32 %v35, %v40
    %v42 = vsub.f32 0.0, %v41
    %v43 = vmul.f32 %v42, 1.442695
    %v44 = vpow.pop %v43
    %v45 = vadd.f32 %v44, 1.0
    %v46 = vrcp.pop %v45
    %47 = vst [vmem:[#allocation6] sm:$0x1] %v46
    // Predicated region
    $region18: #{tpu_custom_call.1} parent=1 // pred_check
      _
    $region19: #{tpu_custom_call.1} parent=1 // pred_check_branch
      %49 = sbr.rel (0) target = $region21
    $region20: #{tpu_custom_call.1} parent=1 // pred_region
      %s51 = ssub.s32 16, 16
      %52 = vsyncadd [#allocation4], %s51
      %s54 = sshll.u32 [#allocation6], 4
      %s55 = int_to_ptr.vmem [resolvable:$true] %s54
      %57 = dma.vmem_to_hbm [thread:$0]  %s55, 16, %s3, [#allocation4]
    $region21: #{tpu_custom_call.1} parent=1 // pred_fallthru
      _
    // Predicated region
    $region22: #{tpu_custom_call.1} parent=1 // pred_check
      _
    $region23: #{tpu_custom_call.1} parent=1 // pred_check_branch
      %59 = sbr.rel (0) target = $region25
    $region24: #{tpu_custom_call.1} parent=1 // pred_region
      %60 = dma.done [#allocation4], 16
    $region25: #{tpu_custom_call.1} parent=1 // pred_fallthru
      _
    %61 = vsyncpa [#allocation4], 1
    %62 = vsyncpa [#allocation5], 1

</llo_original>
